<compile_context>
chip_gen: v5e
topology: v5e:2x2
jax: 0.10.0
libtpu: 0.0.40
codegen_flags: <defaults>
</compile_context>

<pallas_src>
import math
import functools

import jax
import jax.numpy as jnp
from jax.experimental import pallas as pl
from jax.experimental.pallas import tpu as pltpu


def _layer_norm(x, gamma, beta, eps=1e-6):
    mean = jnp.mean(x, axis=-1, keepdims=True)
    var = jnp.mean((x - mean) ** 2, axis=-1, keepdims=True)
    return (x - mean) * jax.lax.rsqrt(var + eps) * gamma + beta


def encoder_layer_kernel(x_ref, wqkv_ref, wo_ref, w1_ref, b1_ref, w2_ref, b2_ref,
                         g1_ref, be1_ref, g2_ref, be2_ref,
                         out_ref, attn_ref,
                         xb_ref, acc_ref,
                         *, n_head, d_k, d_v, ffn_tile, mxu_dtype, exp_dtype):
    # Grid = (batch, head). batch: 'parallel'; head: reduction ('arbitrary')
    # axis over which the attention-output projection accumulates in acc_ref.
    h = pl.program_id(1)
    S, D = acc_ref.shape
    f32 = jnp.float32

    # ---- per-batch-element init (first head step) ----------------------------
    @pl.when(h == 0)
    def _():
        x = x_ref[0]                          # (S, D) f32
        acc_ref[...] = x                      # residual of the attention block
        xb_ref[...] = x.astype(mxu_dtype)     # cast once, reused by every head

    x_m = xb_ref[...]

    # ---- this head's fused Q/K/V projection (1/sqrt(d_k) folded into Wq) -----
    qkv = jnp.dot(x_m, wqkv_ref[h], preferred_element_type=f32)   # (S, 2dk+dv)
    q_m = qkv[:, :d_k].astype(mxu_dtype)
    k_m = qkv[:, d_k:2 * d_k].astype(mxu_dtype)
    v_m = qkv[:, 2 * d_k:].astype(mxu_dtype)

    # ---- scaled dot-product attention for ONE head ----------------------------
    scores = jnp.einsum("qd,kd->qk", q_m, k_m,
                        preferred_element_type=f32)               # (S, S) f32
    scores = scores - jnp.max(scores, axis=-1, keepdims=True)
    # exp in exp_dtype (bf16 EUP on v6e/v7x); row-sum in f32; approx reciprocal.
    p = jnp.exp(scores.astype(exp_dtype))
    denom = jnp.sum(p, axis=-1, keepdims=True, dtype=f32)
    inv = pl.reciprocal(denom, approx=True)
    p = p * inv.astype(exp_dtype)                                 # stays narrow

    # Attention-map writeback: one lane-dense (S, S) store per head (bf16).
    attn_ref[0, 0] = p.astype(attn_ref.dtype)

    pv = jnp.dot(p.astype(mxu_dtype), v_m, preferred_element_type=f32)  # (S, dv)

    # Fold the head concat + fc projection into per-head partial matmuls that
    # accumulate over the head grid axis.
    acc_ref[...] += jnp.dot(pv.astype(mxu_dtype), wo_ref[h],
                            preferred_element_type=f32)           # (S, D)

    # ---- last head: LayerNorm -> position-wise FFN -> LayerNorm -> store -----
    @pl.when(h == n_head - 1)
    def _():
        o = _layer_norm(acc_ref[...], g1_ref[...], be1_ref[...])  # (S, D) f32
        o_m = o.astype(mxu_dtype)
        d_inner = w1_ref.shape[1]
        n_kt = d_inner // ffn_tile

        if n_kt == 1:
            h1 = jnp.dot(o_m, w1_ref[...], preferred_element_type=f32) + b1_ref[...]
            h1 = jnp.maximum(h1, 0.0).astype(mxu_dtype)
            h2 = jnp.dot(h1, w2_ref[...], preferred_element_type=f32)
        else:
            # Stream the FFN over d_inner K-tiles: the full (S, d_inner) f32
            # hidden activation never materializes (VMEM cap on v7x).
            def body(kt, carry):
                s0 = pl.multiple_of(kt * ffn_tile, ffn_tile)
                h1 = (jnp.dot(o_m, w1_ref[:, pl.ds(s0, ffn_tile)],
                              preferred_element_type=f32)
                      + b1_ref[:, pl.ds(s0, ffn_tile)])
                h1 = jnp.maximum(h1, 0.0).astype(mxu_dtype)
                return carry + jnp.dot(h1, w2_ref[pl.ds(s0, ffn_tile), :],
                                       preferred_element_type=f32)
            h2 = jax.lax.fori_loop(0, n_kt, body, jnp.zeros((S, D), f32),
                                   unroll=n_kt <= 8)

        y = _layer_norm(h2 + b2_ref[...] + o, g2_ref[...], be2_ref[...])
        out_ref[0] = y.astype(out_ref.dtype)


def encoder_layer(x, params, *, n_head, d_k, d_v,
                  mxu_dtype=jnp.bfloat16, exp_dtype=jnp.bfloat16,
                  attn_dtype=jnp.bfloat16, ffn_tile=512):
    """Pallas EncoderLayer forward (eval mode, mask=None).

    exp_dtype: jnp.bfloat16 on v6e/v7x (bf16 EUP); pass jnp.float32 on v5e.
    attn_dtype: dtype of the returned attention maps (bf16 halves HBM traffic).
    ffn_tile: d_inner K-tile for the streamed FFN (multiple of 128 or d_inner).
    """
    B, S, D = x.shape
    d_inner = params["w1"].shape[1]
    dqkv = 2 * d_k + d_v

    # FFN d_inner tile (lane-dim slices must stay aligned unless full-extent).
    ffn_tile = min(ffn_tile, d_inner)
    if d_inner % ffn_tile or (ffn_tile % 128 and ffn_tile != d_inner):
        ffn_tile = d_inner

    # ---- wrapper-side weight prep (traced once under jit) --------------------
    #   * stack Wq|Wk|Wv head-major: (H, D, 2*d_k + d_v), q pre-scaled,
    #   * reshape fc to per-head (H, d_v, D) so the head concat folds into
    #     per-head partial output projections,
    #   * cast MXU weights to bf16 (halves weight footprint / DMA).
    scale = 1.0 / math.sqrt(d_k)
    wq = (params["wq"] * scale).reshape(D, n_head, d_k).transpose(1, 0, 2)
    wk = params["wk"].reshape(D, n_head, d_k).transpose(1, 0, 2)
    wv = params["wv"].reshape(D, n_head, d_v).transpose(1, 0, 2)
    wqkv_h = jnp.concatenate([wq, wk, wv], axis=-1).astype(mxu_dtype)  # (H,D,dqkv)
    wo_h = params["wo"].reshape(n_head, d_v, D).astype(mxu_dtype)       # (H,dv,D)
    w1 = params["w1"].astype(mxu_dtype)
    w2 = params["w2"].astype(mxu_dtype)

    kernel = functools.partial(encoder_layer_kernel,
                               n_head=n_head, d_k=d_k, d_v=d_v,
                               ffn_tile=ffn_tile,
                               mxu_dtype=mxu_dtype, exp_dtype=exp_dtype)

    # Constant-index params live WHOLE in VMEM as a single copy (no 2x
    # pipeline double-buffering of weights).
    vmem_res = pl.BlockSpec(memory_space=pltpu.MemorySpace.VMEM)

    grid_spec = pltpu.PrefetchScalarGridSpec(
        num_scalar_prefetch=0,
        grid=(B, n_head),                           # head = innermost reduction
        in_specs=[
            pl.BlockSpec((1, S, D), lambda b, h: (b, 0, 0)),   # x (per batch elem)
            vmem_res,                                          # wqkv_h (H,D,dqkv) bf16
            vmem_res,                                          # wo_h   (H,dv,D)   bf16
            vmem_res,                                          # w1     (D,d_inner) bf16
            vmem_res,                                          # b1     (1,d_inner) f32
            vmem_res,                                          # w2     (d_inner,D) bf16
            vmem_res,                                          # b2     (1,D)       f32
            vmem_res, vmem_res,                                # ln1 gamma / beta
            vmem_res, vmem_res,                                # ln2 gamma / beta
        ],
        out_specs=[
            pl.BlockSpec((1, S, D), lambda b, h: (b, 0, 0)),         # enc_output
            pl.BlockSpec((1, 1, S, S), lambda b, h: (b, h, 0, 0)),   # enc_slf_attn
        ],
        scratch_shapes=[
            pltpu.VMEM((S, D), mxu_dtype),    # x cast to MXU dtype (once / batch)
            pltpu.VMEM((S, D), jnp.float32),  # attention-output accumulator
        ],
    )

    out_shapes = (
        jax.ShapeDtypeStruct((B, S, D), x.dtype),
        jax.ShapeDtypeStruct((B, n_head, S, S), attn_dtype),
    )

    # Explicit scoped-VMEM budget derived from the chosen block sizes (+50%).
    bpe = lambda dt: jnp.dtype(dt).itemsize
    est = (wqkv_h.size + wo_h.size + w1.size + w2.size) * bpe(mxu_dtype)
    est += (d_inner + 5 * D) * 4                       # biases + LN params
    est += 2 * S * D * 4                               # x block, double-buffered
    est += 2 * S * D * bpe(x.dtype)                    # out block, double-buffered
    est += 2 * S * S * bpe(attn_dtype)                 # attn block, double-buffered
    est += S * D * (bpe(mxu_dtype) + 4)                # scratches
    est += S * S * (2 * 4 + bpe(exp_dtype))            # scores / softmax temps
    est += S * D * 4 * 4 + S * max(ffn_tile, dqkv) * 4  # o / h2 / h1-tile / qkv
    vmem_limit = int(min(max(est * 3 // 2, 32 * 2 ** 20), 100 * 2 ** 20))

    fn = pl.pallas_call(
        kernel,
        grid_spec=grid_spec,
        out_shape=out_shapes,
        compiler_params=pltpu.CompilerParams(
            dimension_semantics=("parallel", "arbitrary"),
            vmem_limit_bytes=vmem_limit),
    )
    return fn(x, wqkv_h, wo_h, w1, params["b1"], w2, params["b2"],
              params["ln1_g"], params["ln1_b"], params["ln2_g"], params["ln2_b"])


def encoder_layer_ref(x, params, *, n_head, d_k, d_v, mxu_dtype=jnp.float32):
    """Pure-JAX reference (PyTorch forward, eval mode).  `mxu_dtype` mirrors the
    kernel's matmul-input precision for tight-tolerance checks."""
    B, S, D = x.shape
    dt = mxu_dtype
    f32 = jnp.float32
    scale = 1.0 / math.sqrt(d_k)

    def mm(a, b):
        return jnp.einsum("...ij,jk->...ik", a.astype(dt), b.astype(dt),
                          preferred_element_type=f32)

    q = mm(x, params["wq"] * scale).reshape(B, S, n_head, d_k).transpose(0, 2, 1, 3)
    k = mm(x, params["wk"]).reshape(B, S, n_head, d_k).transpose(0, 2, 1, 3)
    v = mm(x, params["wv"]).reshape(B, S, n_head, d_v).transpose(0, 2, 1, 3)
    scores = jnp.einsum("bhqd,bhkd->bhqk", q.astype(dt), k.astype(dt),
                        preferred_element_type=f32)
    attn = jax.nn.softmax(scores, axis=-1)
    o = jnp.einsum("bhqk,bhkd->bhqd", attn.astype(dt), v.astype(dt),
                   preferred_element_type=f32)
    o = o.transpose(0, 2, 1, 3).reshape(B, S, n_head * d_v)
    o = mm(o, params["wo"]) + x
    o = _layer_norm(o, params["ln1_g"][0], params["ln1_b"][0])
    h1 = jnp.maximum(mm(o, params["w1"]) + params["b1"][0], 0.0)
    y = mm(h1, params["w2"]) + params["b2"][0] + o
    y = _layer_norm(y, params["ln2_g"][0], params["ln2_b"][0])
    return y, attn


if __name__ == "__main__":
    # Small shapes consistent with the module's __init__.
    B, S = 2, 8
    d_model, d_inner, n_head, d_k, d_v = 32, 64, 4, 8, 8

    key = jax.random.PRNGKey(0)
    ks = jax.random.split(key, 10)
    scale = 0.1
    params = {
        "wq": scale * jax.random.normal(ks[0], (d_model, n_head * d_k), jnp.float32),
        "wk": scale * jax.random.normal(ks[1], (d_model, n_head * d_k), jnp.float32),
        "wv": scale * jax.random.normal(ks[2], (d_model, n_head * d_v), jnp.float32),
        "wo": scale * jax.random.normal(ks[3], (n_head * d_v, d_model), jnp.float32),
        "w1": scale * jax.random.normal(ks[4], (d_model, d_inner), jnp.float32),
        "b1": scale * jax.random.normal(ks[5], (1, d_inner), jnp.float32),
        "w2": scale * jax.random.normal(ks[6], (d_inner, d_model), jnp.float32),
        "b2": scale * jax.random.normal(ks[7], (1, d_model), jnp.float32),
        "ln1_g": jnp.ones((1, d_model), jnp.float32),
        "ln1_b": jnp.zeros((1, d_model), jnp.float32),
        "ln2_g": jnp.ones((1, d_model), jnp.float32),
        "ln2_b": jnp.zeros((1, d_model), jnp.float32),
    }

    x = jax.random.normal(ks[8], (B, S, d_model), jnp.float32)

    out, attn = encoder_layer(x, params, n_head=n_head, d_k=d_k, d_v=d_v)
    out = jax.block_until_ready(out)
    attn = jax.block_until_ready(jnp.asarray(attn, jnp.float32))

    # Tight check vs a reference mirroring the kernel's bf16 MXU inputs, loose
    # check vs the full-f32 PyTorch-equivalent reference.
    out_bf, attn_bf = encoder_layer_ref(x, params, n_head=n_head, d_k=d_k,
                                        d_v=d_v, mxu_dtype=jnp.bfloat16)
    out_f32, attn_f32 = encoder_layer_ref(x, params, n_head=n_head, d_k=d_k,
                                          d_v=d_v, mxu_dtype=jnp.float32)

    assert out.shape == (B, S, d_model) and attn.shape == (B, n_head, S, S)
    assert bool(jnp.all(jnp.isfinite(out))) and bool(jnp.all(jnp.isfinite(attn)))
    assert jnp.allclose(out, out_bf, rtol=2e-2, atol=2e-2)
    assert jnp.allclose(attn, attn_bf, rtol=2e-2, atol=2e-2)
    assert jnp.allclose(out, out_f32, rtol=5e-2, atol=5e-2)
    assert jnp.allclose(attn, attn_f32, rtol=5e-2, atol=5e-2)

    print("KERNEL_OK")
</pallas_src>

<mosaic_0001>
module attributes {stable_mosaic.version = 11 : i64} {
  func.func @encoder_layer_kernel(%arg0: i32, %arg1: i32, %arg2: memref<1x8x32xf32, #tpu.memory_space<vmem>>, %arg3: memref<4x32x24xbf16, #tpu.memory_space<vmem>>, %arg4: memref<4x8x32xbf16, #tpu.memory_space<vmem>>, %arg5: memref<32x64xbf16, #tpu.memory_space<vmem>>, %arg6: memref<1x64xf32, #tpu.memory_space<vmem>>, %arg7: memref<64x32xbf16, #tpu.memory_space<vmem>>, %arg8: memref<1x32xf32, #tpu.memory_space<vmem>>, %arg9: memref<1x32xf32, #tpu.memory_space<vmem>>, %arg10: memref<1x32xf32, #tpu.memory_space<vmem>>, %arg11: memref<1x32xf32, #tpu.memory_space<vmem>>, %arg12: memref<1x32xf32, #tpu.memory_space<vmem>>, %arg13: memref<1x8x32xf32, #tpu.memory_space<vmem>>, %arg14: memref<1x1x8x8xbf16, #tpu.memory_space<vmem>>, %arg15: memref<8x32xbf16, #tpu.memory_space<vmem>>, %arg16: memref<8x32xf32, #tpu.memory_space<vmem>>) attributes {dimension_semantics = [#tpu.dimension_semantics<parallel>, #tpu.dimension_semantics<arbitrary>], iteration_bounds = array<i64: 2, 4>, scalar_prefetch = 0 : i64, scratch_operands = 2 : i64, tpu.core_type = #tpu.core_type<tc>, window_params = [{transform_indices = @transform_0, window_bounds = array<i64: 1, 8, 32>}, {pipeline_mode = #tpu.pipeline_mode<synchronous>, transform_indices = @transform_1, window_bounds = array<i64: 4, 32, 24>}, {pipeline_mode = #tpu.pipeline_mode<synchronous>, transform_indices = @transform_2, window_bounds = array<i64: 4, 8, 32>}, {pipeline_mode = #tpu.pipeline_mode<synchronous>, transform_indices = @transform_3, window_bounds = array<i64: 32, 64>}, {pipeline_mode = #tpu.pipeline_mode<synchronous>, transform_indices = @transform_4, window_bounds = array<i64: 1, 64>}, {pipeline_mode = #tpu.pipeline_mode<synchronous>, transform_indices = @transform_5, window_bounds = array<i64: 64, 32>}, {pipeline_mode = #tpu.pipeline_mode<synchronous>, transform_indices = @transform_6, window_bounds = array<i64: 1, 32>}, {pipeline_mode = #tpu.pipeline_mode<synchronous>, transform_indices = @transform_7, window_bounds = array<i64: 1, 32>}, {pipeline_mode = #tpu.pipeline_mode<synchronous>, transform_indices = @transform_8, window_bounds = array<i64: 1, 32>}, {pipeline_mode = #tpu.pipeline_mode<synchronous>, transform_indices = @transform_9, window_bounds = array<i64: 1, 32>}, {pipeline_mode = #tpu.pipeline_mode<synchronous>, transform_indices = @transform_10, window_bounds = array<i64: 1, 32>}, {transform_indices = @transform_11, window_bounds = array<i64: 1, 8, 32>}, {transform_indices = @transform_12, window_bounds = array<i64: 1, 1, 8, 8>}]} {
    %c0_i32 = arith.constant 0 : i32
    %0 = arith.cmpi eq, %arg1, %c0_i32 : i32
    %1 = arith.extui %0 : i1 to i32
    %c0_i32_0 = arith.constant 0 : i32
    %2 = arith.cmpi ne, %1, %c0_i32_0 : i32
    scf.if %2 {
      %c0_20 = arith.constant 0 : index
      %c0_21 = arith.constant 0 : index
      %c0_22 = arith.constant 0 : index
      %43 = vector.load %arg2[%c0_20, %c0_21, %c0_22] : memref<1x8x32xf32, #tpu.memory_space<vmem>>, vector<1x8x32xf32>
      %44 = vector.shape_cast %43 : vector<1x8x32xf32> to vector<8x32xf32>
      %c0_23 = arith.constant 0 : index
      %c0_24 = arith.constant 0 : index
      %45 = vector.load %arg16[%c0_23, %c0_24] : memref<8x32xf32, #tpu.memory_space<vmem>>, vector<8x32xf32>
      tpu.vector_store %arg16[%c0_23, %c0_24], %44 {strides = array<i32>} : memref<8x32xf32, #tpu.memory_space<vmem>>, vector<8x32xf32>,
      %46 = arith.truncf %44 : vector<8x32xf32> to vector<8x32xbf16>
      %c0_25 = arith.constant 0 : index
      %c0_26 = arith.constant 0 : index
      %47 = vector.load %arg15[%c0_25, %c0_26] : memref<8x32xbf16, #tpu.memory_space<vmem>>, vector<8x32xbf16>
      tpu.vector_store %arg15[%c0_25, %c0_26], %46 {strides = array<i32>} : memref<8x32xbf16, #tpu.memory_space<vmem>>, vector<8x32xbf16>,
    } else {
    }
    %c0 = arith.constant 0 : index
    %c0_1 = arith.constant 0 : index
    %3 = vector.load %arg15[%c0, %c0_1] : memref<8x32xbf16, #tpu.memory_space<vmem>>, vector<8x32xbf16>
    %4 = arith.index_cast %arg1 : i32 to index
    %c0_2 = arith.constant 0 : index
    %c0_3 = arith.constant 0 : index
    %5 = vector.load %arg3[%4, %c0_2, %c0_3] : memref<4x32x24xbf16, #tpu.memory_space<vmem>>, vector<1x32x24xbf16>
    %6 = vector.shape_cast %5 : vector<1x32x24xbf16> to vector<32x24xbf16>
    %cst = arith.constant dense<0.000000e+00> : vector<8x24xf32>
    %7 = tpu.matmul %3, %6, %cst {dimension_numbers = #tpu.dot_dimension_numbers<[1], [0], [0], [1], [0, 0, 1, 1], [], []>} : vector<8x32xbf16>, vector<32x24xbf16>, vector<8x24xf32> -> vector<8x24xf32>
    %8 = vector.extract_strided_slice %7 {offsets = [0, 0], sizes = [8, 8], strides = [1, 1]} : vector<8x24xf32> to vector<8x8xf32>
    %9 = arith.truncf %8 : vector<8x8xf32> to vector<8x8xbf16>
    %10 = vector.extract_strided_slice %7 {offsets = [0, 8], sizes = [8, 8], strides = [1, 1]} : vector<8x24xf32> to vector<8x8xf32>
    %11 = arith.truncf %10 : vector<8x8xf32> to vector<8x8xbf16>
    %12 = vector.extract_strided_slice %7 {offsets = [0, 16], sizes = [8, 8], strides = [1, 1]} : vector<8x24xf32> to vector<8x8xf32>
    %13 = arith.truncf %12 : vector<8x8xf32> to vector<8x8xbf16>
    "tpu.trace_start"() <{level = 10 : i32, message = "qd,kd->qk"}> : () -> ()
    %cst_4 = arith.constant dense<0.000000e+00> : vector<8x8xf32>
    %14 = tpu.matmul %9, %11, %cst_4 {dimension_numbers = #tpu.dot_dimension_numbers<[1], [1], [0], [0], [0, 0, 1, 0], [], []>} : vector<8x8xbf16>, vector<8x8xbf16>, vector<8x8xf32> -> vector<8x8xf32>
    "tpu.trace_stop"() : () -> ()
    %cst_5 = arith.constant dense<0xFF800000> : vector<8xf32>
    %15 = vector.multi_reduction <maximumf>, %14, %cst_5 [1] : vector<8x8xf32> to vector<8xf32>
    %16 = vector.shape_cast %15 : vector<8xf32> to vector<8x1xf32>
    %17 = vector.broadcast %16 : vector<8x1xf32> to vector<8x8xf32>
    %18 = arith.subf %14, %17 : vector<8x8xf32>
    %19 = arith.truncf %18 : vector<8x8xf32> to vector<8x8xbf16>
    %20 = math.exp %19 : vector<8x8xbf16>
    %21 = arith.extf %20 : vector<8x8xbf16> to vector<8x8xf32>
    %cst_6 = arith.constant dense<0.000000e+00> : vector<8xf32>
    %22 = vector.multi_reduction <add>, %21, %cst_6 [1] : vector<8x8xf32> to vector<8xf32>
    %23 = vector.shape_cast %22 : vector<8xf32> to vector<8x1xf32>
    %24 = tpu.reciprocal %23 {approx = true} : vector<8x1xf32> -> vector<8x1xf32>
    %25 = arith.truncf %24 : vector<8x1xf32> to vector<8x1xbf16>
    %26 = vector.broadcast %25 : vector<8x1xbf16> to vector<8x8xbf16>
    %27 = arith.mulf %20, %26 : vector<8x8xbf16>
    %c0_7 = arith.constant 0 : index
    %c0_8 = arith.constant 0 : index
    %c0_9 = arith.constant 0 : index
    %c0_10 = arith.constant 0 : index
    %28 = vector.load %arg14[%c0_7, %c0_8, %c0_9, %c0_10] : memref<1x1x8x8xbf16, #tpu.memory_space<vmem>>, vector<1x1x8x8xbf16>
    %29 = vector.shape_cast %28 : vector<1x1x8x8xbf16> to vector<8x8xbf16>
    %30 = vector.shape_cast %27 : vector<8x8xbf16> to vector<1x1x8x8xbf16>
    tpu.vector_store %arg14[%c0_7, %c0_8, %c0_9, %c0_10], %30 {strides = array<i32>} : memref<1x1x8x8xbf16, #tpu.memory_space<vmem>>, vector<1x1x8x8xbf16>,
    %cst_11 = arith.constant dense<0.000000e+00> : vector<8x8xf32>
    %31 = tpu.matmul %27, %13, %cst_11 {dimension_numbers = #tpu.dot_dimension_numbers<[1], [0], [0], [1], [0, 0, 1, 1], [], []>} : vector<8x8xbf16>, vector<8x8xbf16>, vector<8x8xf32> -> vector<8x8xf32>
    %c0_12 = arith.constant 0 : index
    %c0_13 = arith.constant 0 : index
    %32 = vector.load %arg16[%c0_12, %c0_13] : memref<8x32xf32, #tpu.memory_space<vmem>>, vector<8x32xf32>
    %33 = arith.truncf %31 : vector<8x8xf32> to vector<8x8xbf16>
    %34 = arith.index_cast %arg1 : i32 to index
    %c0_14 = arith.constant 0 : index
    %c0_15 = arith.constant 0 : index
    %35 = vector.load %arg4[%34, %c0_14, %c0_15] : memref<4x8x32xbf16, #tpu.memory_space<vmem>>, vector<1x8x32xbf16>
    %36 = vector.shape_cast %35 : vector<1x8x32xbf16> to vector<8x32xbf16>
    %cst_16 = arith.constant dense<0.000000e+00> : vector<8x32xf32>
    %37 = tpu.matmul %33, %36, %cst_16 {dimension_numbers = #tpu.dot_dimension_numbers<[1], [0], [0], [1], [0, 0, 1, 1], [], []>} : vector<8x8xbf16>, vector<8x32xbf16>, vector<8x32xf32> -> vector<8x32xf32>
    %38 = arith.addf %32, %37 : vector<8x32xf32>
    %c0_17 = arith.constant 0 : index
    %c0_18 = arith.constant 0 : index
    %39 = vector.load %arg16[%c0_17, %c0_18] : memref<8x32xf32, #tpu.memory_space<vmem>>, vector<8x32xf32>
    tpu.vector_store %arg16[%c0_17, %c0_18], %38 {strides = array<i32>} : memref<8x32xf32, #tpu.memory_space<vmem>>, vector<8x32xf32>,
    %c3_i32 = arith.constant 3 : i32
    %40 = arith.cmpi eq, %arg1, %c3_i32 : i32
    %41 = arith.extui %40 : i1 to i32
    %c0_i32_19 = arith.constant 0 : i32
    %42 = arith.cmpi ne, %41, %c0_i32_19 : i32
    scf.if %42 {
      %c0_20 = arith.constant 0 : index
      %c0_21 = arith.constant 0 : index
      %43 = vector.load %arg16[%c0_20, %c0_21] : memref<8x32xf32, #tpu.memory_space<vmem>>, vector<8x32xf32>
      %c0_22 = arith.constant 0 : index
      %c0_23 = arith.constant 0 : index
      %44 = vector.load %arg9[%c0_22, %c0_23] : memref<1x32xf32, #tpu.memory_space<vmem>>, vector<1x32xf32>
      %c0_24 = arith.constant 0 : index
      %c0_25 = arith.constant 0 : index
      %45 = vector.load %arg10[%c0_24, %c0_25] : memref<1x32xf32, #tpu.memory_space<vmem>>, vector<1x32xf32>
      %cst_26 = arith.constant dense<0.000000e+00> : vector<8xf32>
      %46 = vector.multi_reduction <add>, %43, %cst_26 [1] : vector<8x32xf32> to vector<8xf32>
      %47 = vector.shape_cast %46 : vector<8xf32> to vector<8x1xf32>
      %cst_27 = arith.constant 3.200000e+01 : f32
      %48 = vector.broadcast %cst_27 : f32 to vector<8x1xf32>
      %49 = arith.divf %47, %48 : vector<8x1xf32>
      %50 = vector.broadcast %49 : vector<8x1xf32> to vector<8x32xf32>
      %51 = arith.subf %43, %50 : vector<8x32xf32>
      %52 = arith.mulf %51, %51 : vector<8x32xf32>
      %cst_28 = arith.constant dense<0.000000e+00> : vector<8xf32>
      %53 = vector.multi_reduction <add>, %52, %cst_28 [1] : vector<8x32xf32> to vector<8xf32>
      %54 = vector.shape_cast %53 : vector<8xf32> to vector<8x1xf32>
      %cst_29 = arith.constant 3.200000e+01 : f32
      %55 = vector.broadcast %cst_29 : f32 to vector<8x1xf32>
      %56 = arith.divf %54, %55 : vector<8x1xf32>
      %57 = vector.broadcast %49 : vector<8x1xf32> to vector<8x32xf32>
      %58 = arith.subf %43, %57 : vector<8x32xf32>
      %cst_30 = arith.constant 9.99999997E-7 : f32
      %59 = vector.broadcast %cst_30 : f32 to vector<8x1xf32>
      %60 = arith.addf %56, %59 : vector<8x1xf32>
      %61 = math.rsqrt %60 : vector<8x1xf32>
      %62 = vector.broadcast %61 : vector<8x1xf32> to vector<8x32xf32>
      %63 = arith.mulf %58, %62 : vector<8x32xf32>
      %64 = vector.broadcast %44 : vector<1x32xf32> to vector<8x32xf32>
      %65 = arith.mulf %63, %64 : vector<8x32xf32>
      %66 = vector.broadcast %45 : vector<1x32xf32> to vector<8x32xf32>
      %67 = arith.addf %65, %66 : vector<8x32xf32>
      %68 = arith.truncf %67 : vector<8x32xf32> to vector<8x32xbf16>
      %c0_31 = arith.constant 0 : index
      %c0_32 = arith.constant 0 : index
      %69 = vector.load %arg5[%c0_31, %c0_32] : memref<32x64xbf16, #tpu.memory_space<vmem>>, vector<32x64xbf16>
      %cst_33 = arith.constant dense<0.000000e+00> : vector<8x64xf32>
      %70 = tpu.matmul %68, %69, %cst_33 {dimension_numbers = #tpu.dot_dimension_numbers<[1], [0], [0], [1], [0, 0, 1, 1], [], []>} : vector<8x32xbf16>, vector<32x64xbf16>, vector<8x64xf32> -> vector<8x64xf32>
      %c0_34 = arith.constant 0 : index
      %c0_35 = arith.constant 0 : index
      %71 = vector.load %arg6[%c0_34, %c0_35] : memref<1x64xf32, #tpu.memory_space<vmem>>, vector<1x64xf32>
      %72 = vector.broadcast %71 : vector<1x64xf32> to vector<8x64xf32>
      %73 = arith.addf %70, %72 : vector<8x64xf32>
      %cst_36 = arith.constant 0.000000e+00 : f32
      %74 = vector.broadcast %cst_36 : f32 to vector<8x64xf32>
      %75 = arith.maximumf %73, %74 : vector<8x64xf32>
      %76 = arith.truncf %75 : vector<8x64xf32> to vector<8x64xbf16>
      %c0_37 = arith.constant 0 : index
      %c0_38 = arith.constant 0 : index
      %77 = vector.load %arg7[%c0_37, %c0_38] : memref<64x32xbf16, #tpu.memory_space<vmem>>, vector<64x32xbf16>
      %cst_39 = arith.constant dense<0.000000e+00> : vector<8x32xf32>
      %78 = tpu.matmul %76, %77, %cst_39 {dimension_numbers = #tpu.dot_dimension_numbers<[1], [0], [0], [1], [0, 0, 1, 1], [], []>} : vector<8x64xbf16>, vector<64x32xbf16>, vector<8x32xf32> -> vector<8x32xf32>
      %c0_40 = arith.constant 0 : index
      %c0_41 = arith.constant 0 : index
      %79 = vector.load %arg8[%c0_40, %c0_41] : memref<1x32xf32, #tpu.memory_space<vmem>>, vector<1x32xf32>
      %80 = vector.broadcast %79 : vector<1x32xf32> to vector<8x32xf32>
      %81 = arith.addf %78, %80 : vector<8x32xf32>
      %82 = arith.addf %81, %67 : vector<8x32xf32>
      %c0_42 = arith.constant 0 : index
      %c0_43 = arith.constant 0 : index
      %83 = vector.load %arg11[%c0_42, %c0_43] : memref<1x32xf32, #tpu.memory_space<vmem>>, vector<1x32xf32>
      %c0_44 = arith.constant 0 : index
      %c0_45 = arith.constant 0 : index
      %84 = vector.load %arg12[%c0_44, %c0_45] : memref<1x32xf32, #tpu.memory_space<vmem>>, vector<1x32xf32>
      %cst_46 = arith.constant dense<0.000000e+00> : vector<8xf32>
      %85 = vector.multi_reduction <add>, %82, %cst_46 [1] : vector<8x32xf32> to vector<8xf32>
      %86 = vector.shape_cast %85 : vector<8xf32> to vector<8x1xf32>
      %cst_47 = arith.constant 3.200000e+01 : f32
      %87 = vector.broadcast %cst_47 : f32 to vector<8x1xf32>
      %88 = arith.divf %86, %87 : vector<8x1xf32>
      %89 = vector.broadcast %88 : vector<8x1xf32> to vector<8x32xf32>
      %90 = arith.subf %82, %89 : vector<8x32xf32>
      %91 = arith.mulf %90, %90 : vector<8x32xf32>
      %cst_48 = arith.constant dense<0.000000e+00> : vector<8xf32>
      %92 = vector.multi_reduction <add>, %91, %cst_48 [1] : vector<8x32xf32> to vector<8xf32>
      %93 = vector.shape_cast %92 : vector<8xf32> to vector<8x1xf32>
      %cst_49 = arith.constant 3.200000e+01 : f32
      %94 = vector.broadcast %cst_49 : f32 to vector<8x1xf32>
      %95 = arith.divf %93, %94 : vector<8x1xf32>
      %96 = vector.broadcast %88 : vector<8x1xf32> to vector<8x32xf32>
      %97 = arith.subf %82, %96 : vector<8x32xf32>
      %cst_50 = arith.constant 9.99999997E-7 : f32
      %98 = vector.broadcast %cst_50 : f32 to vector<8x1xf32>
      %99 = arith.addf %95, %98 : vector<8x1xf32>
      %100 = math.rsqrt %99 : vector<8x1xf32>
      %101 = vector.broadcast %100 : vector<8x1xf32> to vector<8x32xf32>
      %102 = arith.mulf %97, %101 : vector<8x32xf32>
      %103 = vector.broadcast %83 : vector<1x32xf32> to vector<8x32xf32>
      %104 = arith.mulf %102, %103 : vector<8x32xf32>
      %105 = vector.broadcast %84 : vector<1x32xf32> to vector<8x32xf32>
      %106 = arith.addf %104, %105 : vector<8x32xf32>
      %c0_51 = arith.constant 0 : index
      %c0_52 = arith.constant 0 : index
      %c0_53 = arith.constant 0 : index
      %107 = vector.load %arg13[%c0_51, %c0_52, %c0_53] : memref<1x8x32xf32, #tpu.memory_space<vmem>>, vector<1x8x32xf32>
      %108 = vector.shape_cast %107 : vector<1x8x32xf32> to vector<8x32xf32>
      %109 = vector.shape_cast %106 : vector<8x32xf32> to vector<1x8x32xf32>
      tpu.vector_store %arg13[%c0_51, %c0_52, %c0_53], %109 {strides = array<i32>} : memref<1x8x32xf32, #tpu.memory_space<vmem>>, vector<1x8x32xf32>,
    } else {
    }
    return
  }
  func.func @transform_0(%arg0: i32, %arg1: i32) -> (i32, i32, i32) {
    %c0_i32 = arith.constant 0 : i32
    %c0_i32_0 = arith.constant 0 : i32
    %c0_i32_1 = arith.constant 0 : i32
    return %arg0, %c0_i32, %c0_i32_0 : i32, i32, i32
  }
  func.func @transform_1(%arg0: i32, %arg1: i32) -> (i32, i32, i32) {
    %c0_i32 = arith.constant 0 : i32
    %c0_i32_0 = arith.constant 0 : i32
    %c0_i32_1 = arith.constant 0 : i32
    %c0_i32_2 = arith.constant 0 : i32
    return %c0_i32, %c0_i32_0, %c0_i32_1 : i32, i32, i32
  }
  func.func @transform_2(%arg0: i32, %arg1: i32) -> (i32, i32, i32) {
    %c0_i32 = arith.constant 0 : i32
    %c0_i32_0 = arith.constant 0 : i32
    %c0_i32_1 = arith.constant 0 : i32
    %c0_i32_2 = arith.constant 0 : i32
    return %c0_i32, %c0_i32_0, %c0_i32_1 : i32, i32, i32
  }
  func.func @transform_3(%arg0: i32, %arg1: i32) -> (i32, i32) {
    %c0_i32 = arith.constant 0 : i32
    %c0_i32_0 = arith.constant 0 : i32
    %c0_i32_1 = arith.constant 0 : i32
    return %c0_i32, %c0_i32_0 : i32, i32
  }
  func.func @transform_4(%arg0: i32, %arg1: i32) -> (i32, i32) {
    %c0_i32 = arith.constant 0 : i32
    %c0_i32_0 = arith.constant 0 : i32
    %c0_i32_1 = arith.constant 0 : i32
    return %c0_i32, %c0_i32_0 : i32, i32
  }
  func.func @transform_5(%arg0: i32, %arg1: i32) -> (i32, i32) {
    %c0_i32 = arith.constant 0 : i32
    %c0_i32_0 = arith.constant 0 : i32
    %c0_i32_1 = arith.constant 0 : i32
    return %c0_i32, %c0_i32_0 : i32, i32
  }
  func.func @transform_6(%arg0: i32, %arg1: i32) -> (i32, i32) {
    %c0_i32 = arith.constant 0 : i32
    %c0_i32_0 = arith.constant 0 : i32
    %c0_i32_1 = arith.constant 0 : i32
    return %c0_i32, %c0_i32_0 : i32, i32
  }
  func.func @transform_7(%arg0: i32, %arg1: i32) -> (i32, i32) {
    %c0_i32 = arith.constant 0 : i32
    %c0_i32_0 = arith.constant 0 : i32
    %c0_i32_1 = arith.constant 0 : i32
    return %c0_i32, %c0_i32_0 : i32, i32
  }
  func.func @transform_8(%arg0: i32, %arg1: i32) -> (i32, i32) {
    %c0_i32 = arith.constant 0 : i32
    %c0_i32_0 = arith.constant 0 : i32
    %c0_i32_1 = arith.constant 0 : i32
    return %c0_i32, %c0_i32_0 : i32, i32
  }
  func.func @transform_9(%arg0: i32, %arg1: i32) -> (i32, i32) {
    %c0_i32 = arith.constant 0 : i32
    %c0_i32_0 = arith.constant 0 : i32
    %c0_i32_1 = arith.constant 0 : i32
    return %c0_i32, %c0_i32_0 : i32, i32
  }
  func.func @transform_10(%arg0: i32, %arg1: i32) -> (i32, i32) {
    %c0_i32 = arith.constant 0 : i32
    %c0_i32_0 = arith.constant 0 : i32
    %c0_i32_1 = arith.constant 0 : i32
    return %c0_i32, %c0_i32_0 : i32, i32
  }
  func.func @transform_11(%arg0: i32, %arg1: i32) -> (i32, i32, i32) {
    %c0_i32 = arith.constant 0 : i32
    %c0_i32_0 = arith.constant 0 : i32
    %c0_i32_1 = arith.constant 0 : i32
    return %arg0, %c0_i32, %c0_i32_0 : i32, i32, i32
  }
  func.func @transform_12(%arg0: i32, %arg1: i32) -> (i32, i32, i32, i32) {
    %c0_i32 = arith.constant 0 : i32
    %c0_i32_0 = arith.constant 0 : i32
    %c0_i32_1 = arith.constant 0 : i32
    return %arg0, %arg1, %c0_i32, %c0_i32_0 : i32, i32, i32, i32
  }
}

</mosaic_0001>

<llo_original>
// kernel: tpu_custom_call.1
$region0: #{tpu_custom_call.1}
  #allocation0 [shape = 'u32[]', space=smem, size = 0x4, offset = 0x4, fixed_abs, tag = 'smem constant byte address 0x4 - core index']
  #allocation1 [shape = 'u32[72,128]{1,0:T(1,128)}', space=vmem, size = 0x9000, scoped, tag = 'internal scratch']
  #allocation2 [shape = 'bf16[8,32]{1,0:T(8,128)(2,1)}', space=vmem, size = 0x800, scoped, tag = 'scratch operand']
  #allocation3 [shape = 'f32[8,32]{1,0:T(8,128)}', space=vmem, size = 0x1000, scoped, tag = 'scratch operand']
  %s0 = inlined_call_operand.vmem [shape: f32[2,8,32], index: 0, kind: input, shape index: {}]
  %s1 = inlined_call_operand.vmem [shape: bf16[4,32,24], index: 1, kind: input, shape index: {}]
  %s2 = inlined_call_operand.vmem [shape: bf16[4,8,32], index: 2, kind: input, shape index: {}]
  %s3 = inlined_call_operand.vmem [shape: bf16[32,64], index: 3, kind: input, shape index: {}]
  %s4 = inlined_call_operand.vmem [shape: f32[1,64], index: 4, kind: input, shape index: {}]
  %s5 = inlined_call_operand.vmem [shape: bf16[64,32], index: 5, kind: input, shape index: {}]
  %s6 = inlined_call_operand.vmem [shape: f32[1,32], index: 6, kind: input, shape index: {}]
  %s7 = inlined_call_operand.vmem [shape: f32[1,32], index: 7, kind: input, shape index: {}]
  %s8 = inlined_call_operand.vmem [shape: f32[1,32], index: 8, kind: input, shape index: {}]
  %s9 = inlined_call_operand.vmem [shape: f32[1,32], index: 9, kind: input, shape index: {}]
  %s10 = inlined_call_operand.vmem [shape: f32[1,32], index: 10, kind: input, shape index: {}]
  %s11 = inlined_call_operand.hbm [shape: f32[2,8,32], index: 11, kind: output, shape index: {0}]
  %s12 = inlined_call_operand.hbm [shape: bf16[2,4,8,8], index: 12, kind: output, shape index: {1}]
  %13 = xla_tuple %s11, %s12
  %s14 = sld [smem:[#allocation0]]
  $region93: #{tpu_custom_call.1} parent=0
    _
  %s16 = ssub.s32 1, %s14
  %s17 = scalar_select 0, %s16, %s14
  $region1: #{tpu_custom_call.1} parent=0
    #allocation4 [shape = 'u8[8192]{0}', space=vmem, size = 0x2000, scoped, tag = 'output window, operand 0']
    #allocation5 [shape = 's32[2]{0}', space=sflag, size = 0x8, scoped, tag = 'scoped memory for tpu_custom_call.1']
    #allocation6 [shape = 'u8[4096]{0}', space=vmem, size = 0x1000, scoped, tag = 'output window, operand 1']
    #allocation7 [shape = 's32[2]{0}', space=sflag, size = 0x8, scoped, tag = 'scoped memory for tpu_custom_call.1']
    %18 = vsyncpa [#allocation5], 0
    %s19 = scalar_lea.sflag [#allocation5], 1
    %20 = vsyncpa %s19, 0
    %21 = vsyncpa [#allocation7], 0
    %s22 = scalar_lea.sflag [#allocation7], 1
    %23 = vsyncpa %s22, 0
    loop: start=0, step=1, limit=10
    $region2: #{tpu_custom_call.1} parent=1 // loop_pre_header
      _
    $region3: #{tpu_custom_call.1} parent=1 // loop_header
      %s25 = sphi 0, %s29
      %p26 = scmp.ge.s32.totalorder %s25, 10
      %s32 = sphi 0, %s44
      %s33 = sphi 0, %s40
      %s34 = sphi 0, %s32
      %s35 = sphi 0, %s33
      %s36 = sphi 0, %s34
      %s37 = sphi 0, %s35
      %s47 = sphi 0, %s49
      %s50 = sphi 0, %s47
      %s51 = sphi 0, %s50
      %s67 = sphi 0, %s51
      %s71 = sphi 0, %s71
      %s73 = sphi 0, %s71
      %s74 = sphi 0, %s73
      %s88 = sphi 0, %s74
      %s92 = sphi 0, %s92
      %s94 = sphi 0, %s92
      %s95 = sphi 0, %s94
      %s109 = sphi 0, %s95
      %s113 = sphi 0, %s113
      %s115 = sphi 0, %s113
      %s116 = sphi 0, %s115
      %s130 = sphi 0, %s116
      %s134 = sphi 0, %s134
      %s136 = sphi 0, %s134
      %s137 = sphi 0, %s136
      %s151 = sphi 0, %s137
      %s155 = sphi 0, %s155
      %s157 = sphi 0, %s155
      %s158 = sphi 0, %s157
      %s172 = sphi 0, %s158
      %s176 = sphi 0, %s176
      %s178 = sphi 0, %s176
      %s179 = sphi 0, %s178
      %s193 = sphi 0, %s179
      %s197 = sphi 0, %s197
      %s199 = sphi 0, %s197
      %s200 = sphi 0, %s199
      %s214 = sphi 0, %s200
      %s218 = sphi 0, %s218
      %s220 = sphi 0, %s218
      %s221 = sphi 0, %s220
      %s235 = sphi 0, %s221
      %s239 = sphi 0, %s239
      %s241 = sphi 0, %s239
      %s242 = sphi 0, %s241
      %s256 = sphi 0, %s242
      %s260 = sphi 0, %s260
      %s262 = sphi 0, %s260
      %s263 = sphi 0, %s262
      %s277 = sphi 0, %s263
      %s283 = sphi 0, %s285
      %s286 = sphi 0, %s283
      %s287 = sphi 0, %s286
      %s303 = sphi 0, %s287
      %s311 = sphi 0, %s313
      %s314 = sphi 0, %s311
      %s315 = sphi 0, %s314
      %s331 = sphi 0, %s315
    $region4: #{tpu_custom_call.1} parent=1 // loop_header_branch
      %28 = sbr.rel (%p26) target = $region8
    $region5: #{tpu_custom_call.1} parent=1 // loop_body
      %s30 = ssub.s32 %s25, 1
      %s31 = ssub.s32 %s25, 2
      %s38 = sadd.s32 1, %s33
      %p39 = scmp.ge.s32.totalorder %s38, 4
      %s40 = scalar_select %p39, 0, %s38
      %s41 = sadd.s32 1, %s32
      %s42 = scalar_select %p39, %s41, %s32
      %p43 = scmp.ge.s32.totalorder %s42, 2
      %s44 = scalar_select %p43, 0, %s42
      %s45 = ssub.s32 %s32, %s44
      %p46 = scmp.eq.s32.totalorder %s45, 0
      %s48 = sadd.s32 %s47, 1
      %s49 = scalar_select %p46, %s47, %s48
      %p52 = pneg %p46
      %p53 = scmp.eq.s32.totalorder %s25, 7
      %p54 = por %p52, %p53
      %p55 = scmp.ne.s32.totalorder %s47, %s50
      %p56 = scmp.eq.s32.totalorder %s25, 0
      %p57 = por %p55, %p56
      %p58 = scmp.ne.s32.totalorder %s47, %s50
      %p59 = scmp.eq.s32.totalorder %s30, 7
      %p60 = por %p58, %p59
      %p61 = scmp.ne.s32.totalorder %s50, %s51
      %p62 = scmp.eq.s32.totalorder %s30, 0
      %p63 = por %p61, %p62
      %p64 = scmp.ne.s32.totalorder %s50, %s51
      %p65 = scmp.eq.s32.totalorder %s31, 7
      %p66 = por %p64, %p65
      %p68 = scmp.ne.s32.totalorder %s51, %s67
      %p69 = scmp.eq.s32.totalorder %s31, 0
      %p70 = por %p68, %p69
      %s72 = sadd.s32 %s71, 1
      %p75 = scmp.eq.s32.totalorder %s25, 7
      %p76 = scmp.ne.s32.totalorder %s71, %s73
      %p77 = scmp.eq.s32.totalorder %s25, 0
      %p78 = por %p76, %p77
      %p79 = scmp.ne.s32.totalorder %s71, %s73
      %p80 = scmp.eq.s32.totalorder %s30, 7
      %p81 = por %p79, %p80
      %p82 = scmp.ne.s32.totalorder %s73, %s74
      %p83 = scmp.eq.s32.totalorder %s30, 0
      %p84 = por %p82, %p83
      %p85 = scmp.ne.s32.totalorder %s73, %s74
      %p86 = scmp.eq.s32.totalorder %s31, 7
      %p87 = por %p85, %p86
      %p89 = scmp.ne.s32.totalorder %s74, %s88
      %p90 = scmp.eq.s32.totalorder %s31, 0
      %p91 = por %p89, %p90
      %s93 = sadd.s32 %s92, 1
      %p96 = scmp.eq.s32.totalorder %s25, 7
      %p97 = scmp.ne.s32.totalorder %s92, %s94
      %p98 = scmp.eq.s32.totalorder %s25, 0
      %p99 = por %p97, %p98
      %p100 = scmp.ne.s32.totalorder %s92, %s94
      %p101 = scmp.eq.s32.totalorder %s30, 7
      %p102 = por %p100, %p101
      %p103 = scmp.ne.s32.totalorder %s94, %s95
      %p104 = scmp.eq.s32.totalorder %s30, 0
      %p105 = por %p103, %p104
      %p106 = scmp.ne.s32.totalorder %s94, %s95
      %p107 = scmp.eq.s32.totalorder %s31, 7
      %p108 = por %p106, %p107
      %p110 = scmp.ne.s32.totalorder %s95, %s109
      %p111 = scmp.eq.s32.totalorder %s31, 0
      %p112 = por %p110, %p111
      %s114 = sadd.s32 %s113, 1
      %p117 = scmp.eq.s32.totalorder %s25, 7
      %p118 = scmp.ne.s32.totalorder %s113, %s115
      %p119 = scmp.eq.s32.totalorder %s25, 0
      %p120 = por %p118, %p119
      %p121 = scmp.ne.s32.totalorder %s113, %s115
      %p122 = scmp.eq.s32.totalorder %s30, 7
      %p123 = por %p121, %p122
      %p124 = scmp.ne.s32.totalorder %s115, %s116
      %p125 = scmp.eq.s32.totalorder %s30, 0
      %p126 = por %p124, %p125
      %p127 = scmp.ne.s32.totalorder %s115, %s116
      %p128 = scmp.eq.s32.totalorder %s31, 7
      %p129 = por %p127, %p128
      %p131 = scmp.ne.s32.totalorder %s116, %s130
      %p132 = scmp.eq.s32.totalorder %s31, 0
      %p133 = por %p131, %p132
      %s135 = sadd.s32 %s134, 1
      %p138 = scmp.eq.s32.totalorder %s25, 7
      %p139 = scmp.ne.s32.totalorder %s134, %s136
      %p140 = scmp.eq.s32.totalorder %s25, 0
      %p141 = por %p139, %p140
      %p142 = scmp.ne.s32.totalorder %s134, %s136
      %p143 = scmp.eq.s32.totalorder %s30, 7
      %p144 = por %p142, %p143
      %p145 = scmp.ne.s32.totalorder %s136, %s137
      %p146 = scmp.eq.s32.totalorder %s30, 0
      %p147 = por %p145, %p146
      %p148 = scmp.ne.s32.totalorder %s136, %s137
      %p149 = scmp.eq.s32.totalorder %s31, 7
      %p150 = por %p148, %p149
      %p152 = scmp.ne.s32.totalorder %s137, %s151
      %p153 = scmp.eq.s32.totalorder %s31, 0
      %p154 = por %p152, %p153
      %s156 = sadd.s32 %s155, 1
      %p159 = scmp.eq.s32.totalorder %s25, 7
      %p160 = scmp.ne.s32.totalorder %s155, %s157
      %p161 = scmp.eq.s32.totalorder %s25, 0
      %p162 = por %p160, %p161
      %p163 = scmp.ne.s32.totalorder %s155, %s157
      %p164 = scmp.eq.s32.totalorder %s30, 7
      %p165 = por %p163, %p164
      %p166 = scmp.ne.s32.totalorder %s157, %s158
      %p167 = scmp.eq.s32.totalorder %s30, 0
      %p168 = por %p166, %p167
      %p169 = scmp.ne.s32.totalorder %s157, %s158
      %p170 = scmp.eq.s32.totalorder %s31, 7
      %p171 = por %p169, %p170
      %p173 = scmp.ne.s32.totalorder %s158, %s172
      %p174 = scmp.eq.s32.totalorder %s31, 0
      %p175 = por %p173, %p174
      %s177 = sadd.s32 %s176, 1
      %p180 = scmp.eq.s32.totalorder %s25, 7
      %p181 = scmp.ne.s32.totalorder %s176, %s178
      %p182 = scmp.eq.s32.totalorder %s25, 0
      %p183 = por %p181, %p182
      %p184 = scmp.ne.s32.totalorder %s176, %s178
      %p185 = scmp.eq.s32.totalorder %s30, 7
      %p186 = por %p184, %p185
      %p187 = scmp.ne.s32.totalorder %s178, %s179
      %p188 = scmp.eq.s32.totalorder %s30, 0
      %p189 = por %p187, %p188
      %p190 = scmp.ne.s32.totalorder %s178, %s179
      %p191 = scmp.eq.s32.totalorder %s31, 7
      %p192 = por %p190, %p191
      %p194 = scmp.ne.s32.totalorder %s179, %s193
      %p195 = scmp.eq.s32.totalorder %s31, 0
      %p196 = por %p194, %p195
      %s198 = sadd.s32 %s197, 1
      %p201 = scmp.eq.s32.totalorder %s25, 7
      %p202 = scmp.ne.s32.totalorder %s197, %s199
      %p203 = scmp.eq.s32.totalorder %s25, 0
      %p204 = por %p202, %p203
      %p205 = scmp.ne.s32.totalorder %s197, %s199
      %p206 = scmp.eq.s32.totalorder %s30, 7
      %p207 = por %p205, %p206
      %p208 = scmp.ne.s32.totalorder %s199, %s200
      %p209 = scmp.eq.s32.totalorder %s30, 0
      %p210 = por %p208, %p209
      %p211 = scmp.ne.s32.totalorder %s199, %s200
      %p212 = scmp.eq.s32.totalorder %s31, 7
      %p213 = por %p211, %p212
      %p215 = scmp.ne.s32.totalorder %s200, %s214
      %p216 = scmp.eq.s32.totalorder %s31, 0
      %p217 = por %p215, %p216
      %s219 = sadd.s32 %s218, 1
      %p222 = scmp.eq.s32.totalorder %s25, 7
      %p223 = scmp.ne.s32.totalorder %s218, %s220
      %p224 = scmp.eq.s32.totalorder %s25, 0
      %p225 = por %p223, %p224
      %p226 = scmp.ne.s32.totalorder %s218, %s220
      %p227 = scmp.eq.s32.totalorder %s30, 7
      %p228 = por %p226, %p227
      %p229 = scmp.ne.s32.totalorder %s220, %s221
      %p230 = scmp.eq.s32.totalorder %s30, 0
      %p231 = por %p229, %p230
      %p232 = scmp.ne.s32.totalorder %s220, %s221
      %p233 = scmp.eq.s32.totalorder %s31, 7
      %p234 = por %p232, %p233
      %p236 = scmp.ne.s32.totalorder %s221, %s235
      %p237 = scmp.eq.s32.totalorder %s31, 0
      %p238 = por %p236, %p237
      %s240 = sadd.s32 %s239, 1
      %p243 = scmp.eq.s32.totalorder %s25, 7
      %p244 = scmp.ne.s32.totalorder %s239, %s241
      %p245 = scmp.eq.s32.totalorder %s25, 0
      %p246 = por %p244, %p245
      %p247 = scmp.ne.s32.totalorder %s239, %s241
      %p248 = scmp.eq.s32.totalorder %s30, 7
      %p249 = por %p247, %p248
      %p250 = scmp.ne.s32.totalorder %s241, %s242
      %p251 = scmp.eq.s32.totalorder %s30, 0
      %p252 = por %p250, %p251
      %p253 = scmp.ne.s32.totalorder %s241, %s242
      %p254 = scmp.eq.s32.totalorder %s31, 7
      %p255 = por %p253, %p254
      %p257 = scmp.ne.s32.totalorder %s242, %s256
      %p258 = scmp.eq.s32.totalorder %s31, 0
      %p259 = por %p257, %p258
      %s261 = sadd.s32 %s260, 1
      %p264 = scmp.eq.s32.totalorder %s25, 7
      %p265 = scmp.ne.s32.totalorder %s260, %s262
      %p266 = scmp.eq.s32.totalorder %s25, 0
      %p267 = por %p265, %p266
      %p268 = scmp.ne.s32.totalorder %s260, %s262
      %p269 = scmp.eq.s32.totalorder %s30, 7
      %p270 = por %p268, %p269
      %p271 = scmp.ne.s32.totalorder %s262, %s263
      %p272 = scmp.eq.s32.totalorder %s30, 0
      %p273 = por %p271, %p272
      %p274 = scmp.ne.s32.totalorder %s262, %s263
      %p275 = scmp.eq.s32.totalorder %s31, 7
      %p276 = por %p274, %p275
      %p278 = scmp.ne.s32.totalorder %s263, %s277
      %p279 = scmp.eq.s32.totalorder %s31, 0
      %p280 = por %p278, %p279
      %s281 = ssub.s32 %s32, %s44
      %p282 = scmp.eq.s32.totalorder %s281, 0
      %s284 = sadd.s32 %s283, 1
      %s285 = scalar_select %p282, %s283, %s284
      %p288 = pneg %p282
      %p289 = scmp.eq.s32.totalorder %s25, 7
      %p290 = por %p288, %p289
      %p291 = scmp.ne.s32.totalorder %s283, %s286
      %p292 = scmp.eq.s32.totalorder %s25, 0
      %p293 = por %p291, %p292
      %p294 = scmp.ne.s32.totalorder %s283, %s286
      %p295 = scmp.eq.s32.totalorder %s30, 7
      %p296 = por %p294, %p295
      %p297 = scmp.ne.s32.totalorder %s286, %s287
      %p298 = scmp.eq.s32.totalorder %s30, 0
      %p299 = por %p297, %p298
      %p300 = scmp.ne.s32.totalorder %s286, %s287
      %p301 = scmp.eq.s32.totalorder %s31, 7
      %p302 = por %p300, %p301
      %p304 = scmp.ne.s32.totalorder %s287, %s303
      %p305 = scmp.eq.s32.totalorder %s31, 0
      %p306 = por %p304, %p305
      %s307 = ssub.s32 %s32, %s44
      %s308 = ssub.s32 %s33, %s40
      %s309 = sor.u32 %s307, %s308
      %p310 = scmp.eq.s32.totalorder %s309, 0
      %s312 = sadd.s32 %s311, 1
      %s313 = scalar_select %p310, %s311, %s312
      %p316 = pneg %p310
      %p317 = scmp.eq.s32.totalorder %s25, 7
      %p318 = por %p316, %p317
      %p319 = scmp.ne.s32.totalorder %s311, %s314
      %p320 = scmp.eq.s32.totalorder %s25, 0
      %p321 = por %p319, %p320
      %p322 = scmp.ne.s32.totalorder %s311, %s314
      %p323 = scmp.eq.s32.totalorder %s30, 7
      %p324 = por %p322, %p323
      %p325 = scmp.ne.s32.totalorder %s314, %s315
      %p326 = scmp.eq.s32.totalorder %s30, 0
      %p327 = por %p325, %p326
      %p328 = scmp.ne.s32.totalorder %s314, %s315
      %p329 = scmp.eq.s32.totalorder %s31, 7
      %p330 = por %p328, %p329
      %p332 = scmp.ne.s32.totalorder %s315, %s331
      %p333 = scmp.eq.s32.totalorder %s31, 0
      %p334 = por %p332, %p333
      %p335 = scmp.le.s32.totalorder 1, %s25
      %p336 = scmp.lt.s32.totalorder %s25, 9
      %p337 = pnand %p335, %p336
      %p338 = pneg %p337
      // Predicated region
      $region9: #{tpu_custom_call.1} parent=5 // pred_check
        _
      $region10: #{tpu_custom_call.1} parent=5 // pred_check_branch
        %340 = sbr.rel (%p337) target = $region12
      $region11: #{tpu_custom_call.1} parent=5 // pred_region
        %s341 = ssub.s32 %s25, 1
        // Predicated region
        $region13: #{tpu_custom_call.1} parent=11 // pred_check
          %p342 = pneg %p84
        $region14: #{tpu_custom_call.1} parent=11 // pred_check_branch
          %344 = sbr.rel (%p342) target = $region16
        $region15: #{tpu_custom_call.1} parent=11 // pred_region
          _
        $region16: #{tpu_custom_call.1} parent=11 // pred_fallthru
          _
        // Predicated region
        $region17: #{tpu_custom_call.1} parent=11 // pred_check
          %p345 = pneg %p105
        $region18: #{tpu_custom_call.1} parent=11 // pred_check_branch
          %347 = sbr.rel (%p345) target = $region20
        $region19: #{tpu_custom_call.1} parent=11 // pred_region
          _
        $region20: #{tpu_custom_call.1} parent=11 // pred_fallthru
          _
        // Predicated region
        $region21: #{tpu_custom_call.1} parent=11 // pred_check
          %p348 = pneg %p126
        $region22: #{tpu_custom_call.1} parent=11 // pred_check_branch
          %350 = sbr.rel (%p348) target = $region24
        $region23: #{tpu_custom_call.1} parent=11 // pred_region
          _
        $region24: #{tpu_custom_call.1} parent=11 // pred_fallthru
          _
        // Predicated region
        $region25: #{tpu_custom_call.1} parent=11 // pred_check
          %p351 = pneg %p147
        $region26: #{tpu_custom_call.1} parent=11 // pred_check_branch
          %353 = sbr.rel (%p351) target = $region28
        $region27: #{tpu_custom_call.1} parent=11 // pred_region
          _
        $region28: #{tpu_custom_call.1} parent=11 // pred_fallthru
          _
        // Predicated region
        $region29: #{tpu_custom_call.1} parent=11 // pred_check
          %p354 = pneg %p168
        $region30: #{tpu_custom_call.1} parent=11 // pred_check_branch
          %356 = sbr.rel (%p354) target = $region32
        $region31: #{tpu_custom_call.1} parent=11 // pred_region
          _
        $region32: #{tpu_custom_call.1} parent=11 // pred_fallthru
          _
        // Predicated region
        $region33: #{tpu_custom_call.1} parent=11 // pred_check
          %p357 = pneg %p189
        $region34: #{tpu_custom_call.1} parent=11 // pred_check_branch
          %359 = sbr.rel (%p357) target = $region36
        $region35: #{tpu_custom_call.1} parent=11 // pred_region
          _
        $region36: #{tpu_custom_call.1} parent=11 // pred_fallthru
          _
        // Predicated region
        $region37: #{tpu_custom_call.1} parent=11 // pred_check
          %p360 = pneg %p210
        $region38: #{tpu_custom_call.1} parent=11 // pred_check_branch
          %362 = sbr.rel (%p360) target = $region40
        $region39: #{tpu_custom_call.1} parent=11 // pred_region
          _
        $region40: #{tpu_custom_call.1} parent=11 // pred_fallthru
          _
        // Predicated region
        $region41: #{tpu_custom_call.1} parent=11 // pred_check
          %p363 = pneg %p231
        $region42: #{tpu_custom_call.1} parent=11 // pred_check_branch
          %365 = sbr.rel (%p363) target = $region44
        $region43: #{tpu_custom_call.1} parent=11 // pred_region
          _
        $region44: #{tpu_custom_call.1} parent=11 // pred_fallthru
          _
        // Predicated region
        $region45: #{tpu_custom_call.1} parent=11 // pred_check
          %p366 = pneg %p252
        $region46: #{tpu_custom_call.1} parent=11 // pred_check_branch
          %368 = sbr.rel (%p366) target = $region48
        $region47: #{tpu_custom_call.1} parent=11 // pred_region
          _
        $region48: #{tpu_custom_call.1} parent=11 // pred_fallthru
          _
        // Predicated region
        $region49: #{tpu_custom_call.1} parent=11 // pred_check
          %p369 = pneg %p273
        $region50: #{tpu_custom_call.1} parent=11 // pred_check_branch
          %371 = sbr.rel (%p369) target = $region52
        $region51: #{tpu_custom_call.1} parent=11 // pred_region
          _
        $region52: #{tpu_custom_call.1} parent=11 // pred_fallthru
          _
      $region12: #{tpu_custom_call.1} parent=5 // pred_fallthru
        _
      %p372 = scmp.lt.s32.totalorder %s25, 8
      // Predicated region
      $region53: #{tpu_custom_call.1} parent=5 // pred_check
        %p373 = pneg %p372
      $region54: #{tpu_custom_call.1} parent=5 // pred_check_branch
        %375 = sbr.rel (%p373) target = $region56
      $region55: #{tpu_custom_call.1} parent=5 // pred_region
        // Predicated region
        $region57: #{tpu_custom_call.1} parent=55 // pred_check
          %p376 = pneg %p57
        $region58: #{tpu_custom_call.1} parent=55 // pred_check_branch
          %378 = sbr.rel (%p376) target = $region60
        $region59: #{tpu_custom_call.1} parent=55 // pred_region
          %p379 = scmp.lt.s32.totalorder %s32, 1
          %s380 = scalar_select %p379, %s32, 1
          %s381 = smul.addr %s380, 8
          %s382 = scalar_lea.vmem %s0, %s381
        $region60: #{tpu_custom_call.1} parent=55 // pred_fallthru
          _
      $region56: #{tpu_custom_call.1} parent=5 // pred_fallthru
        _
      %p383 = scmp.le.s32.totalorder 1, %s25
      %p384 = scmp.lt.s32.totalorder %s25, 9
      %p385 = pnand %p383, %p384
      %p386 = pneg %p385
      // Predicated region
      $region61: #{tpu_custom_call.1} parent=5 // pred_check
        _
      $region62: #{tpu_custom_call.1} parent=5 // pred_check_branch
        %388 = sbr.rel (%p385) target = $region64
      $region63: #{tpu_custom_call.1} parent=5 // pred_region
        %s389 = ssub.s32 %s25, 1
        %p390 = scmp.lt.s32.totalorder %s34, 1
        %s391 = scalar_select %p390, %s34, 1
        %s392 = smul.addr %s391, 8
        %s393 = scalar_lea.vmem %s0, %s392
        %p394 = pneg %p63
        %p395 = pneg %p60
        %p396 = pneg %p84
        %p397 = pneg %p81
        %p398 = pneg %p105
        %p399 = pneg %p102
        %p400 = pneg %p126
        %p401 = pneg %p123
        %p402 = pneg %p147
        %p403 = pneg %p144
        %p404 = pneg %p168
        %p405 = pneg %p165
        %p406 = pneg %p189
        %p407 = pneg %p186
        %p408 = pneg %p210
        %p409 = pneg %p207
        %p410 = pneg %p231
        %p411 = pneg %p228
        %p412 = pneg %p252
        %p413 = pneg %p249
        %p414 = pneg %p273
        %p415 = pneg %p270
        %p416 = pneg %p299
        %p417 = pneg %p296
        %s418 = sand.u32 %s286, 1
        %s419 = scalar_lea.sflag [#allocation5], %s418
        %s420 = sand.u32 %s286, 1
        %s421 = smul.addr %s420, 8
        %s422 = scalar_lea.vmem [#allocation4], %s421
        %p423 = pneg %p327
        %p424 = pneg %p324
        %s425 = sand.u32 %s314, 1
        %s426 = scalar_lea.sflag [#allocation7], %s425
        %s427 = sand.u32 %s314, 1
        %s428 = smul.addr %s427, 4
        %s429 = scalar_lea.vmem [#allocation6], %s428
        %p430 = scmp.lt.s32.totalorder %s34, 1
        %s431 = scalar_select %p430, %s34, 1
        %s432 = smul.addr %s431, 8
        %s433 = scalar_lea.vmem %s0, %s432
        %p435 = scmp.eq.s32.totalorder %s35, 0
        // Predicated region
        $region65: #{tpu_custom_call.1} parent=63 // pred_check
          %p436 = pneg %p435
        $region66: #{tpu_custom_call.1} parent=63 // pred_check_branch
          %438 = sbr.rel (%p436) target = $region68
        $region67: #{tpu_custom_call.1} parent=63 // pred_region
          %v439 = vld [vmem:[%s433] sm:$0xff]
          %vm440 = vcmask 261120
          %441 = vst.msk [vmem:[#allocation3] sm:$0xff] %vm440, %v439
          %v442 = vpack.c.bf16 %v439, %v439
          %vm443 = vcmask 257024
          %444 = vst.msk [vmem:[#allocation2] sm:$0xf] %vm443, %v442
        $region68: #{tpu_custom_call.1} parent=63 // pred_fallthru
          _
        %v445 = vld [vmem:[#allocation2] sm:$0xf]
        %s446 = smul.u32 %s35, 4
        %s447 = smul.addr %s446, 4
        %s448 = scalar_lea.vmem %s1, %s447
        %v449 = vld [vmem:[%s448] sm:$0xf]
        %v450 = vld [vmem:[%s448 + $0x4] sm:$0xf]
        %v451 = vld [vmem:[%s448 + $0x8] sm:$0xf]
        %v452 = vld [vmem:[%s448 + $0xc] sm:$0xf]
        %v457 = vunpack.c.l.b16 %v449
        %v458 = vunpack.c.l.b16 %v450
        %v459 = vunpack.c.l.b16 %v451
        %v460 = vunpack.c.l.b16 %v452
        %v461 = vpack.c.b16 %v458, %v457
        %v462 = vpack.c.b16 %v460, %v459
        %vm465 = vcmask 261120
        %v467 = vsel %vm465, %v445, 0
        %469 = vmatpush.bf16.msra.mxu0 0
        %470 = vmatpush.bf16.msra.mxu0 0
        %471 = vmatpush.bf16.msra.mxu0 0
        %472 = vmatpush.bf16.msra.mxu0 0
        %473 = vmatpush.bf16.msra.mxu0 0
        %474 = vmatpush.bf16.msra.mxu0 0
        %475 = vmatpush.bf16.msra.mxu0 %v462
        %476 = vmatpush.bf16.msra.mxu0 %v461
        %477 = vmatmul.bf16.gmra.mxu0 %v467
        %v478 = vpop.f32.mrf.mxu0
        %v479 = vadd.f32 0.0, %v478
        %v480 = vpop.f32.mrf.mxu0
        %481 = vdwg.mxu0
        %v482 = vpack.c.bf16 %v479, %v479
        %484 = vrot.lane.b32.xlu0 %v482, 120
        %v485 = vpop.permute.xlu0 %484
        %vm486 = vcmask 64512
        %v488 = vsel %vm486, %v482, 0
        %v491 = vsel %vm486, %v485, 0
        %493 = vmatpush.bf16.xpose.msra.mxu0 0
        %494 = vmatpush.bf16.xpose.msra.mxu0 0
        %495 = vmatpush.bf16.xpose.msra.mxu0 0
        %496 = vmatpush.bf16.xpose.msra.mxu0 0
        %497 = vmatpush.bf16.xpose.msra.mxu0 0
        %498 = vmatpush.bf16.xpose.msra.mxu0 0
        %499 = vmatpush.bf16.xpose.msra.mxu0 0
        %500 = vmatpush.bf16.xpose.msra.mxu0 %v491
        %501 = vmatmul.bf16.gmra.mxu0 %v488
        %v502 = vpop.f32.mrf.mxu0
        %v503 = vadd.f32 0.0, %v502
        %v504 = vpop.f32.mrf.mxu0
        %505 = vdwg.mxu0
        %v506 = vsel %vm486, %v503, -inf
        %507 = vmax.xlane.f32.xlu0 %v506
        %v508 = vpop.xlane.xlu0 %507
        %v509 = vsub.f32 %v503, %v508
        %v510 = vpack.c.bf16 %v509, %v509
        %v511 = vunpack.c.l.bf16 %v510
        %v512 = vmul.f32 %v511, 1.442695
        %v513 = vpow.pop %v512
        %v514 = vpack.c.bf16 %v513, %v513
        %v515 = vunpack.c.l.bf16 %v514
        %v516 = vsel %vm486, %v515, 0.0
        %517 = vadd.xlane.f32.xlu0 %v516
        %v518 = vpop.xlane.xlu0 %517
        %v519 = vrcp.pop %v518
        %v520 = vpack.c.bf16 %v519, %v519
        %v521 = vunpack.c.l.bf16 %v520
        %v522 = vmul.f32 %v515, %v521
        %v523 = vpack.c.bf16 %v522, %v522
        %vm524 = vcmask 60416
        %525 = vst.msk [vmem:[%s429] sm:$0xf] %vm524, %v523
        %526 = vrot.lane.b32.xlu0 %v482, 112
        %v527 = vpop.permute.xlu0 %526
        %v529 = vsel %vm486, %v523, 0
        %vm531 = vcmask 1043456
        %v533 = vsel %vm531, %v527, 0
        %535 = vmatpush.bf16.msra.mxu0 0
        %536 = vmatpush.bf16.msra.mxu0 0
        %537 = vmatpush.bf16.msra.mxu0 0
        %538 = vmatpush.bf16.msra.mxu0 0
        %539 = vmatpush.bf16.msra.mxu0 0
        %540 = vmatpush.bf16.msra.mxu0 0
        %541 = vmatpush.bf16.msra.mxu0 0
        %542 = vmatpush.bf16.msra.mxu0 %v533
        %543 = vmatmul.bf16.gmra.mxu0 %v529
        %v544 = vpop.f32.mrf.mxu0
        %v545 = vadd.f32 0.0, %v544
        %v546 = vpop.f32.mrf.mxu0
        %547 = vdwg.mxu0
        %v548 = vld [vmem:[#allocation3] sm:$0xff]
        %v549 = vpack.c.bf16 %v545, %v545
        %s550 = smul.addr %s35, 4
        %s551 = scalar_lea.vmem %s2, %s550
        %v552 = vld [vmem:[%s551] sm:$0xf]
        %v554 = vsel %vm486, %v549, 0
        %v557 = vsel %vm531, %v552, 0
        %559 = vmatpush.bf16.msra.mxu0 0
        %560 = vmatpush.bf16.msra.mxu0 0
        %561 = vmatpush.bf16.msra.mxu0 0
        %562 = vmatpush.bf16.msra.mxu0 0
        %563 = vmatpush.bf16.msra.mxu0 0
        %564 = vmatpush.bf16.msra.mxu0 0
        %565 = vmatpush.bf16.msra.mxu0 0
        %566 = vmatpush.bf16.msra.mxu0 %v557
        %567 = vmatmul.bf16.gmra.mxu0 %v554
        %v568 = vpop.f32.mrf.mxu0
        %v569 = vadd.f32 0.0, %v568
        %v570 = vpop.f32.mrf.mxu0
        %571 = vdwg.mxu0
        %v572 = vadd.f32 %v548, %v569
        %573 = vst.msk [vmem:[#allocation3] sm:$0xff] %vm465, %v572
        %p574 = scmp.eq.s32.totalorder %s35, 3
        // Predicated region
        $region69: #{tpu_custom_call.1} parent=63 // pred_check
          %p575 = pneg %p574
        $region70: #{tpu_custom_call.1} parent=63 // pred_check_branch
          %577 = sbr.rel (%p575) target = $region72
        $region71: #{tpu_custom_call.1} parent=63 // pred_region
          %v578 = vld [vmem:[#allocation3] sm:$0xff]
          %v579 = vld [vmem:[%s7] sm:$0x1]
          %v580 = vld [vmem:[%s8] sm:$0x1]
          %v581 = vsel %vm465, %v578, 0.0
          %582 = vadd.xlane.f32.xlu0 %v581
          %v583 = vpop.xlane.xlu0 %582
          %v584 = vrcp.pop 32.0
          %v585 = vmul.f32 32.0, %v584
          %v586 = vsub.f32 1.0, %v585
          %v587 = vmul.f32 %v584, %v586
          %v588 = vadd.f32 %v584, %v587
          %vm589 = vweird.f32 %v584
          %v590 = vsel %vm589, %v584, %v588
          %v591 = vmul.f32 %v583, %v590
          %v592 = vsub.f32 %v578, %v591
          %v593 = vmul.f32 %v592, %v592
          %v594 = vsel %vm465, %v593, 0.0
          %595 = vadd.xlane.f32.xlu0 %v594
          %v596 = vpop.xlane.xlu0 %595
          %v597 = vmul.f32 %v596, %v590
          %v598 = vadd.f32 %v597, 1e-06
          %v599 = vrsqrt.pop %v598
          %v600 = vmul.f32 %v599, %v598
          %v601 = vmul.f32 %v600, %v599
          %v602 = vmul.f32 0.5, %v601
          %v603 = vsub.f32 1.5, %v602
          %v604 = vmul.f32 %v599, %v603
          %vm605 = vweird.f32 %v598
          %vm606 = vweird.f32 %v599
          %vm607 = vmor %vm605, %vm606
          %v608 = vsel %vm607, %v599, %v604
          %v609 = vmul.f32 %v592, %v608
          %v611 = vperm.slane %v579, 0
          %v613 = vmul.f32 %v609, %v611
          %v615 = vperm.slane %v580, 0
          %v617 = vadd.f32 %v613, %v615
          %v618 = vpack.c.bf16 %v617, %v617
          %v619 = vld [vmem:[%s3] sm:$0xf]
          %v620 = vld [vmem:[%s3 + $0x4] sm:$0xf]
          %v621 = vld [vmem:[%s3 + $0x8] sm:$0xf]
          %v622 = vld [vmem:[%s3 + $0xc] sm:$0xf]
          %v623 = vld [vmem:[%s4] sm:$0x1]
          %v625 = vperm.slane %v623, 0
          %v631 = vunpack.c.l.b16 %v619
          %v632 = vunpack.c.l.b16 %v620
          %v633 = vunpack.c.l.b16 %v621
          %v634 = vunpack.c.l.b16 %v622
          %v635 = vpack.c.b16 %v632, %v631
          %v636 = vpack.c.b16 %v634, %v633
          %v640 = vsel %vm465, %v618, 0
          %642 = vmatpush.bf16.msra.mxu0 0
          %643 = vmatpush.bf16.msra.mxu0 0
          %644 = vmatpush.bf16.msra.mxu0 0
          %645 = vmatpush.bf16.msra.mxu0 0
          %646 = vmatpush.bf16.msra.mxu0 0
          %647 = vmatpush.bf16.msra.mxu0 0
          %648 = vmatpush.bf16.msra.mxu0 %v636
          %649 = vmatpush.bf16.msra.mxu0 %v635
          %650 = vmatmul.bf16.gmra.mxu0 %v640
          %v651 = vpop.f32.mrf.mxu0
          %v652 = vadd.f32 %v625, %v651
          %v653 = vpop.f32.mrf.mxu0
          %654 = vdwg.mxu0
          %v655 = vmax.f32 %v652, 0.0
          %v656 = vpack.c.bf16 %v655, %v655
          %v657 = vld [vmem:[%s5] sm:$0xf]
          %v658 = vld [vmem:[%s5 + $0x4] sm:$0xf]
          %v659 = vld [vmem:[%s5 + $0x8] sm:$0xf]
          %v660 = vld [vmem:[%s5 + $0xc] sm:$0xf]
          %v661 = vld [vmem:[%s5 + $0x10] sm:$0xf]
          %v662 = vld [vmem:[%s5 + $0x14] sm:$0xf]
          %v663 = vld [vmem:[%s5 + $0x18] sm:$0xf]
          %v664 = vld [vmem:[%s5 + $0x1c] sm:$0xf]
          %v665 = vld [vmem:[%s6] sm:$0x1]
          %v667 = vperm.slane %v665, 0
          %v677 = vunpack.c.l.b16 %v657
          %v678 = vunpack.c.l.b16 %v658
          %v679 = vunpack.c.l.b16 %v659
          %v680 = vunpack.c.l.b16 %v660
          %v681 = vunpack.c.l.b16 %v661
          %v682 = vunpack.c.l.b16 %v662
          %v683 = vunpack.c.l.b16 %v663
          %v684 = vunpack.c.l.b16 %v664
          %v685 = vpack.c.b16 %v678, %v677
          %v686 = vpack.c.b16 %v680, %v679
          %v687 = vpack.c.b16 %v682, %v681
          %v688 = vpack.c.b16 %v684, %v683
          %vm693 = vcmask 523264
          %v695 = vsel %vm693, %v656, 0
          %697 = vmatpush.bf16.msra.mxu0 0
          %698 = vmatpush.bf16.msra.mxu0 0
          %699 = vmatpush.bf16.msra.mxu0 0
          %700 = vmatpush.bf16.msra.mxu0 0
          %701 = vmatpush.bf16.msra.mxu0 %v688
          %702 = vmatpush.bf16.msra.mxu0 %v687
          %703 = vmatpush.bf16.msra.mxu0 %v686
          %704 = vmatpush.bf16.msra.mxu0 %v685
          %705 = vmatmul.bf16.gmra.mxu0 %v695
          %v706 = vpop.f32.mrf.mxu0
          %v707 = vadd.f32 %v667, %v706
          %v708 = vpop.f32.mrf.mxu0
          %709 = vdwg.mxu0
          %v710 = vadd.f32 %v707, %v617
          %v711 = vld [vmem:[%s9] sm:$0x1]
          %v712 = vld [vmem:[%s10] sm:$0x1]
          %v713 = vsel %vm465, %v710, 0.0
          %714 = vadd.xlane.f32.xlu0 %v713
          %v715 = vpop.xlane.xlu0 %714
          %v716 = vmul.f32 %v715, %v590
          %v717 = vsub.f32 %v710, %v716
          %v718 = vmul.f32 %v717, %v717
          %v719 = vsel %vm465, %v718, 0.0
          %720 = vadd.xlane.f32.xlu0 %v719
          %v721 = vpop.xlane.xlu0 %720
          %v722 = vmul.f32 %v721, %v590
          %v723 = vadd.f32 %v722, 1e-06
          %v724 = vrsqrt.pop %v723
          %v725 = vmul.f32 %v724, %v723
          %v726 = vmul.f32 %v725, %v724
          %v727 = vmul.f32 0.5, %v726
          %v728 = vsub.f32 1.5, %v727
          %v729 = vmul.f32 %v724, %v728
          %vm730 = vweird.f32 %v723
          %vm731 = vweird.f32 %v724
          %vm732 = vmor %vm730, %vm731
          %v733 = vsel %vm732, %v724, %v729
          %v734 = vmul.f32 %v717, %v733
          %v736 = vperm.slane %v711, 0
          %v738 = vmul.f32 %v734, %v736
          %v740 = vperm.slane %v712, 0
          %v742 = vadd.f32 %v738, %v740
          %743 = vst.msk [vmem:[%s422] sm:$0xff] %vm465, %v742
        $region72: #{tpu_custom_call.1} parent=63 // pred_fallthru
          _
        %s744 = sand.u32 %s286, 1
        %s745 = scalar_lea.sflag [#allocation5], %s744
        %s746 = sand.u32 %s286, 1
        %s747 = smul.addr %s746, 8
        %s748 = scalar_lea.vmem [#allocation4], %s747
        %s749 = sand.u32 %s314, 1
        %s750 = scalar_lea.sflag [#allocation7], %s749
        %s751 = sand.u32 %s314, 1
        %s752 = smul.addr %s751, 4
        %s753 = scalar_lea.vmem [#allocation6], %s752
        // Predicated region
        $region73: #{tpu_custom_call.1} parent=63 // pred_check
          %p754 = pneg %p296
        $region74: #{tpu_custom_call.1} parent=63 // pred_check_branch
          %756 = sbr.rel (%p754) target = $region76
        $region75: #{tpu_custom_call.1} parent=63 // pred_region
          %758 = vsyncadd %s745, 0
          %s759 = smul.addr %s34, 8
          %s760 = scalar_lea.hbm %s11, %s759
          %s762 = sshll.u32 %s748, 4
          %s763 = int_to_ptr.vmem [resolvable:$true] %s762
          %s764 = sshll.u32 %s760, 4
          %s765 = int_to_ptr.hbm [resolvable:$true] %s764
          %767 = dma.vmem_to_hbm [thread:$0]  %s763, 128, %s765, %s745
        $region76: #{tpu_custom_call.1} parent=63 // pred_fallthru
          _
        // Predicated region
        $region77: #{tpu_custom_call.1} parent=63 // pred_check
          %p768 = pneg %p324
        $region78: #{tpu_custom_call.1} parent=63 // pred_check_branch
          %770 = sbr.rel (%p768) target = $region80
        $region79: #{tpu_custom_call.1} parent=63 // pred_region
          %772 = vsyncadd %s750, 0
          %s773 = smul.addr %s34, 4
          %s774 = sadd.s32 %s35, %s773
          %s775 = smul.addr %s774, 4
          %s776 = scalar_lea.hbm %s12, %s775
          %s778 = sshll.u32 %s753, 4
          %s779 = int_to_ptr.vmem [resolvable:$true] %s778
          %s780 = sshll.u32 %s776, 4
          %s781 = int_to_ptr.hbm [resolvable:$true] %s780
          %783 = dma.vmem_to_hbm [thread:$0]  %s779, 64, %s781, %s750
        $region80: #{tpu_custom_call.1} parent=63 // pred_fallthru
          _
      $region64: #{tpu_custom_call.1} parent=5 // pred_fallthru
        _
      %p784 = scmp.le.s32.totalorder 2, %s25
      // Predicated region
      $region81: #{tpu_custom_call.1} parent=5 // pred_check
        %p785 = pneg %p784
      $region82: #{tpu_custom_call.1} parent=5 // pred_check_branch
        %787 = sbr.rel (%p785) target = $region84
      $region83: #{tpu_custom_call.1} parent=5 // pred_region
        %s788 = ssub.s32 %s25, 2
        // Predicated region
        $region85: #{tpu_custom_call.1} parent=83 // pred_check
          %p789 = pneg %p302
        $region86: #{tpu_custom_call.1} parent=83 // pred_check_branch
          %791 = sbr.rel (%p789) target = $region88
        $region87: #{tpu_custom_call.1} parent=83 // pred_region
          %s792 = sand.u32 %s287, 1
          %s793 = scalar_lea.sflag [#allocation5], %s792
          %s794 = sand.u32 %s287, 1
          %s795 = smul.addr %s794, 8
          %s796 = scalar_lea.vmem [#allocation4], %s795
          %798 = dma.done %s793, 128
        $region88: #{tpu_custom_call.1} parent=83 // pred_fallthru
          _
        // Predicated region
        $region89: #{tpu_custom_call.1} parent=83 // pred_check
          %p799 = pneg %p330
        $region90: #{tpu_custom_call.1} parent=83 // pred_check_branch
          %801 = sbr.rel (%p799) target = $region92
        $region91: #{tpu_custom_call.1} parent=83 // pred_region
          %s802 = sand.u32 %s315, 1
          %s803 = scalar_lea.sflag [#allocation7], %s802
          %s804 = sand.u32 %s315, 1
          %s805 = smul.addr %s804, 4
          %s806 = scalar_lea.vmem [#allocation6], %s805
          %808 = dma.done %s803, 64
        $region92: #{tpu_custom_call.1} parent=83 // pred_fallthru
          _
      $region84: #{tpu_custom_call.1} parent=5 // pred_fallthru
        _
    $region6: #{tpu_custom_call.1} parent=1 // loop_footer
      %s29 = sadd.s32 1, %s25
    $region7: #{tpu_custom_call.1} parent=1 // loop_footer_branch
      %24 = sbr.rel target = $region3
    $region8: #{tpu_custom_call.1} parent=1 // loop_exit
      _
    %809 = vsyncpa [#allocation5], 1
    %s810 = scalar_lea.sflag [#allocation5], 1
    %811 = vsyncpa %s810, 1
    %812 = vsyncpa [#allocation7], 1
    %s813 = scalar_lea.sflag [#allocation7], 1
    %814 = vsyncpa %s813, 1

</llo_original>
